<compile_context>
chip_gen: v6e
topology: v6e:2x2x1
jax: 0.10.0
libtpu: 0.0.40
codegen_flags: <defaults>
</compile_context>

<pallas_src>
import math

import jax
import jax.numpy as jnp
from jax.experimental import pallas as pl
from jax.experimental.pallas import tpu as pltpu

_LANE = 128
_VMEM_LIMIT_BYTES = 48 * 1024 * 1024  # < 64 MiB physical on v7x, fine on v5e/v6e


# ---------------------------------------------------------------------------
# Reference table (identical math to the torch __init__ buffer) -- used only
# for correctness checking in __main__ and by the fallback path.
# ---------------------------------------------------------------------------
def make_sinusoidal_pe(d_model: int, max_len: int = 5000) -> jnp.ndarray:
    position = jnp.arange(max_len, dtype=jnp.float32)[:, None]
    div_term = jnp.exp(jnp.arange(0, d_model, 2, dtype=jnp.float32)
                       * (-math.log(10000.0) / d_model))
    pe = jnp.zeros((max_len, d_model), dtype=jnp.float32)
    pe = pe.at[:, 0::2].set(jnp.sin(position * div_term))
    pe = pe.at[:, 1::2].set(jnp.cos(position * div_term))
    return pe


# ---------------------------------------------------------------------------
# Kernels
# ---------------------------------------------------------------------------
def _pe_gen_add_kernel(offset_ref, div_ref, x_ref, o_ref):
    """Generate the sinusoidal PE for this tile in-kernel and add it to x.

    offset_ref : SMEM (1,) int32   -- scalar-prefetched start position
    div_ref    : VMEM (1, C) f32   -- div_full[c] = div_term[c // 2] (resident)
    x_ref      : VMEM (Tr, C)      -- input tile
    o_ref      : VMEM (Tr, C) f32  -- output tile (torch promotion semantics)
    """
    tile_r = x_ref.shape[0]
    pos0 = offset_ref[0] + pl.program_id(0) * tile_r
    shape = x_ref.shape
    row = jax.lax.broadcasted_iota(jnp.int32, shape, 0) + pos0
    col = jax.lax.broadcasted_iota(jnp.int32, shape, 1)
    angle = row.astype(jnp.float32) * div_ref[...]          # (1, C) broadcasts
    # even cols -> sin, odd cols -> cos (same formula as the torch buffer).
    pe = jnp.where((col % 2) == 1, jnp.cos(angle), jnp.sin(angle))
    o_ref[...] = (x_ref[...].astype(jnp.float32) + pe).astype(o_ref.dtype)


def _pe_stream_add_kernel(pe_ref, x_ref, o_ref):
    """Fallback: stream precomputed pe rows and add (pure elementwise)."""
    o_ref[...] = x_ref[...].astype(o_ref.dtype) + pe_ref[...]


# ---------------------------------------------------------------------------
# Tiling helpers
# ---------------------------------------------------------------------------
def _min_sublane(dtype) -> int:
    return {4: 8, 2: 16, 1: 32}.get(jnp.dtype(dtype).itemsize, 8)


def _target_tile_bytes() -> int:
    try:
        kind = jax.devices()[0].device_kind.lower()
    except Exception:  # pragma: no cover
        kind = ""
    # v5e: per-step overhead already <5% at 2 MiB; bigger buys nothing.
    if "v5" in kind:
        return 2 * 1024 * 1024
    # v6e / v7x: 4 MiB tiles amortize the ~0.35 us per-grid-step overhead.
    return 4 * 1024 * 1024


def _round_up(v: int, m: int) -> int:
    return ((v + m - 1) // m) * m


def _choose_row_tile(rows: int, row_bytes: int, in_dtype) -> int:
    min_sub = _min_sublane(in_dtype)
    target = _target_tile_bytes()
    t = max(min_sub, (target // max(row_bytes, 1)) // min_sub * min_sub)
    # Keep >= 2 grid steps when the shape allows it: enables DMA/compute
    # overlap and lets the single "parallel" axis shard across v7x's 2 TCs.
    if rows >= 2 * min_sub:
        t = min(t, _round_up(pl.cdiv(rows, 2), min_sub))
    if t >= rows:
        return rows  # single full block (always a legal block shape)
    return t


# ---------------------------------------------------------------------------
# Forward wrapper
# ---------------------------------------------------------------------------
_USE_IN_KERNEL_PE = {"ok": True}   # flipped to False once if sin/cos won't lower


def positional_encoding_forward(x: jnp.ndarray,
                                offset=0,
                                max_len: int = 5000) -> jnp.ndarray:
    """Equivalent of PositionalEncoding(d_model, max_len).forward(x, offset)."""
    N, d_model = x.shape
    if isinstance(offset, int) and N + offset > max_len:
        raise ValueError("PositionalEncoding buffer not large enough.")
    # TODO(synk): a traced (non-static) offset overrunning max_len is not
    # checked at runtime; callers must guarantee offset + N <= max_len.

    out_dtype = jnp.promote_types(x.dtype, jnp.float32)  # torch promotion (bf16 -> f32)

    # Lane-dense layout: pad the feature dim to a multiple of 128 so stores are
    # full-lane unmasked vst (only hit for odd d_model; padded cols sliced off).
    pad_c = (-d_model) % _LANE
    cols = d_model + pad_c
    x_in = jnp.pad(x, ((0, 0), (0, pad_c))) if pad_c else x

    itemsize = jnp.dtype(x.dtype).itemsize
    tile_r = _choose_row_tile(N, cols * itemsize, x.dtype)
    grid = (pl.cdiv(N, tile_r),)
    compiler_params = pltpu.CompilerParams(
        dimension_semantics=("parallel",),
        vmem_limit_bytes=_VMEM_LIMIT_BYTES,
    )

    # div_full[c] = div_term[c // 2]; a few KiB, resident in VMEM for all steps.
    div_term = jnp.exp(jnp.arange(0, d_model, 2, dtype=jnp.float32)
                       * (-math.log(10000.0) / d_model))
    div_full = jnp.repeat(div_term, 2)[:d_model]
    if pad_c:
        div_full = jnp.pad(div_full, (0, pad_c))
    div_full = div_full.reshape(1, cols)

    if _USE_IN_KERNEL_PE["ok"]:
        try:
            out = pl.pallas_call(
                _pe_gen_add_kernel,
                out_shape=jax.ShapeDtypeStruct((N, cols), out_dtype),
                grid_spec=pltpu.PrefetchScalarGridSpec(
                    num_scalar_prefetch=1,
                    grid=grid,
                    in_specs=[
                        pl.BlockSpec((1, cols), lambda i, off: (0, 0)),       # div_full
                        pl.BlockSpec((tile_r, cols), lambda i, off: (i, 0)),  # x tile
                    ],
                    out_specs=pl.BlockSpec((tile_r, cols), lambda i, off: (i, 0)),
                ),
                compiler_params=compiler_params,
            )(jnp.asarray([offset], dtype=jnp.int32), div_full, x_in)
            out = jax.block_until_ready(out)
            return out[:, :d_model] if pad_c else out
        except Exception:
            # sin/cos not lowerable on this build -> permanently use fallback.
            _USE_IN_KERNEL_PE["ok"] = False

    # ---- Fallback: compute only the needed pe rows (f32) and stream them ----
    pos = (jnp.arange(N, dtype=jnp.float32)
           + jnp.asarray(offset, dtype=jnp.float32))[:, None]
    angle = pos * div_full                                   # (N, cols)
    col_is_odd = (jnp.arange(cols) % 2) == 1
    pe_rows = jnp.where(col_is_odd[None, :], jnp.cos(angle), jnp.sin(angle))
    if pad_c:
        pe_rows = pe_rows * (jnp.arange(cols) < d_model)[None, :].astype(jnp.float32)

    out = pl.pallas_call(
        _pe_stream_add_kernel,
        out_shape=jax.ShapeDtypeStruct((N, cols), out_dtype),
        grid=grid,
        in_specs=[pl.BlockSpec((tile_r, cols), lambda i: (i, 0)),
                  pl.BlockSpec((tile_r, cols), lambda i: (i, 0))],
        out_specs=pl.BlockSpec((tile_r, cols), lambda i: (i, 0)),
        compiler_params=compiler_params,
    )(pe_rows, x_in)
    out = jax.block_until_ready(out)
    return out[:, :d_model] if pad_c else out


# ---------------------------------------------------------------------------
# Self-test
# ---------------------------------------------------------------------------
if __name__ == "__main__":
    key = jax.random.PRNGKey(0)

    # Check 1: f32, small toy shape, non-128 d_model (padded-lane path),
    # 2-step grid (tile_r = 8).
    N, d_model, max_len, offset = 16, 32, 64, 3
    x = jax.random.normal(key, (N, d_model), dtype=jnp.float32)
    out = jax.block_until_ready(
        positional_encoding_forward(x, offset=offset, max_len=max_len))
    pe = make_sinusoidal_pe(d_model, max_len)
    ref = x + pe[offset:offset + N, :]
    assert out.shape == (N, d_model) and out.dtype == jnp.float32
    assert jnp.allclose(out, ref, atol=1e-4, rtol=1e-4), "mismatch (f32 path)"

    # Check 2: bf16 input, 128-aligned d_model, multi-block grid with a
    # partial last block; output is f32 (torch bf16+f32 promotion).
    N2, d_model2, max_len2, offset2 = 48, 256, 128, 5
    x2 = jax.random.normal(jax.random.PRNGKey(0), (N2, d_model2),
                           dtype=jnp.float32).astype(jnp.bfloat16)
    out2 = jax.block_until_ready(
        positional_encoding_forward(x2, offset=offset2, max_len=max_len2))
    pe2 = make_sinusoidal_pe(d_model2, max_len2)
    ref2 = x2.astype(jnp.float32) + pe2[offset2:offset2 + N2, :]
    assert out2.shape == (N2, d_model2) and out2.dtype == jnp.float32
    assert jnp.allclose(out2, ref2, atol=1e-4, rtol=1e-4), "mismatch (bf16 path)"

    print("KERNEL_OK")
</pallas_src>

<mosaic_0001>
module attributes {stable_mosaic.version = 11 : i64} {
  func.func @_pe_gen_add_kernel(%arg0: i32, %arg1: memref<1xi32, #tpu.memory_space<smem>>, %arg2: memref<1x128xf32, #tpu.memory_space<vmem>>, %arg3: memref<8x128xf32, #tpu.memory_space<vmem>>, %arg4: memref<8x128xf32, #tpu.memory_space<vmem>>) attributes {dimension_semantics = [#tpu.dimension_semantics<parallel>], iteration_bounds = array<i64: 2>, scalar_prefetch = 1 : i64, scratch_operands = 0 : i64, tpu.core_type = #tpu.core_type<tc>, window_params = [{pipeline_mode = #tpu.pipeline_mode<synchronous>, transform_indices = @transform_0, window_bounds = array<i64: 1, 128>}, {transform_indices = @transform_1, window_bounds = array<i64: 8, 128>}, {transform_indices = @transform_2, window_bounds = array<i64: 8, 128>}]} {
    %c0 = arith.constant 0 : index
    %0 = memref.load %arg1[%c0] : memref<1xi32, #tpu.memory_space<smem>>
    %c8_i32 = arith.constant 8 : i32
    %1 = arith.muli %arg0, %c8_i32 : i32
    %2 = arith.addi %0, %1 : i32
    %3 = tpu.iota {dimensions = array<i32: 0>} : vector<8x128xi32>
    %4 = vector.broadcast %2 : i32 to vector<8x128xi32>
    %5 = arith.addi %3, %4 : vector<8x128xi32>
    %6 = tpu.iota {dimensions = array<i32: 1>} : vector<8x128xi32>
    %7 = arith.sitofp %5 : vector<8x128xi32> to vector<8x128xf32>
    %c0_0 = arith.constant 0 : index
    %c0_1 = arith.constant 0 : index
    %8 = vector.load %arg2[%c0_0, %c0_1] : memref<1x128xf32, #tpu.memory_space<vmem>>, vector<1x128xf32>
    %9 = vector.broadcast %8 : vector<1x128xf32> to vector<8x128xf32>
    %10 = arith.mulf %7, %9 : vector<8x128xf32>
    %c2_i32 = arith.constant 2 : i32
    %c0_i32 = arith.constant 0 : i32
    %11 = arith.cmpi eq, %c2_i32, %c0_i32 : i32
    %c1_i32 = arith.constant 1 : i32
    %12 = arith.select %11, %c1_i32, %c2_i32 : i32
    %13 = vector.broadcast %12 : i32 to vector<8x128xi32>
    %14 = arith.remsi %6, %13 : vector<8x128xi32>
    %c0_i32_2 = arith.constant 0 : i32
    %15 = vector.broadcast %c0_i32_2 : i32 to vector<8x128xi32>
    %16 = arith.cmpi ne, %14, %15 : vector<8x128xi32>
    %c0_i32_3 = arith.constant 0 : i32
    %17 = vector.broadcast %c0_i32_3 : i32 to vector<8x128xi32>
    %18 = arith.cmpi slt, %14, %17 : vector<8x128xi32>
    %c0_i32_4 = arith.constant 0 : i32
    %19 = arith.cmpi slt, %12, %c0_i32_4 : i32
    %20 = vector.broadcast %19 : i1 to vector<8x128xi1>
    %21 = vector.broadcast %20 : vector<8x128xi1> to vector<8x128xi1>
    %22 = arith.xori %18, %21 : vector<8x128xi1>
    %23 = arith.andi %22, %16 : vector<8x128xi1>
    %24 = vector.broadcast %12 : i32 to vector<8x128xi32>
    %25 = arith.addi %14, %24 : vector<8x128xi32>
    %26 = arith.select %23, %25, %14 : vector<8x128xi1>, vector<8x128xi32>
    %c1_i32_5 = arith.constant 1 : i32
    %27 = vector.broadcast %c1_i32_5 : i32 to vector<8x128xi32>
    %28 = arith.cmpi eq, %26, %27 : vector<8x128xi32>
    %29 = math.cos %10 : vector<8x128xf32>
    %30 = math.sin %10 : vector<8x128xf32>
    %31 = arith.select %28, %29, %30 : vector<8x128xi1>, vector<8x128xf32>
    %c0_6 = arith.constant 0 : index
    %c0_7 = arith.constant 0 : index
    %32 = vector.load %arg3[%c0_6, %c0_7] : memref<8x128xf32, #tpu.memory_space<vmem>>, vector<8x128xf32>
    %33 = arith.addf %32, %31 : vector<8x128xf32>
    %c0_8 = arith.constant 0 : index
    %c0_9 = arith.constant 0 : index
    %34 = vector.load %arg4[%c0_8, %c0_9] : memref<8x128xf32, #tpu.memory_space<vmem>>, vector<8x128xf32>
    tpu.vector_store %arg4[%c0_8, %c0_9], %33 {strides = array<i32>} : memref<8x128xf32, #tpu.memory_space<vmem>>, vector<8x128xf32>,
    return
  }
  func.func @transform_0(%arg0: i32, %arg1: memref<1xi32, #tpu.memory_space<smem>>) -> (i32, i32) {
    %c0_i32 = arith.constant 0 : i32
    %c0_i32_0 = arith.constant 0 : i32
    %c0_i32_1 = arith.constant 0 : i32
    return %c0_i32, %c0_i32_0 : i32, i32
  }
  func.func @transform_1(%arg0: i32, %arg1: memref<1xi32, #tpu.memory_space<smem>>) -> (i32, i32) {
    %c0_i32 = arith.constant 0 : i32
    %c0_i32_0 = arith.constant 0 : i32
    return %arg0, %c0_i32 : i32, i32
  }
  func.func @transform_2(%arg0: i32, %arg1: memref<1xi32, #tpu.memory_space<smem>>) -> (i32, i32) {
    %c0_i32 = arith.constant 0 : i32
    %c0_i32_0 = arith.constant 0 : i32
    return %arg0, %c0_i32 : i32, i32
  }
}

module attributes {stable_mosaic.version = 11 : i64} {
  func.func @_pe_stream_add_kernel(%arg0: i32, %arg1: memref<8x128xf32, #tpu.memory_space<vmem>>, %arg2: memref<8x128xf32, #tpu.memory_space<vmem>>, %arg3: memref<8x128xf32, #tpu.memory_space<vmem>>) attributes {dimension_semantics = [#tpu.dimension_semantics<parallel>], iteration_bounds = array<i64: 2>, scalar_prefetch = 0 : i64, scratch_operands = 0 : i64, tpu.core_type = #tpu.core_type<tc>, window_params = [{transform_indices = @transform_0, window_bounds = array<i64: 8, 128>}, {transform_indices = @transform_1, window_bounds = array<i64: 8, 128>}, {transform_indices = @transform_2, window_bounds = array<i64: 8, 128>}]} {
    %c0 = arith.constant 0 : index
    %c0_0 = arith.constant 0 : index
    %0 = vector.load %arg2[%c0, %c0_0] : memref<8x128xf32, #tpu.memory_space<vmem>>, vector<8x128xf32>
    %c0_1 = arith.constant 0 : index
    %c0_2 = arith.constant 0 : index
    %1 = vector.load %arg1[%c0_1, %c0_2] : memref<8x128xf32, #tpu.memory_space<vmem>>, vector<8x128xf32>
    %2 = arith.addf %0, %1 : vector<8x128xf32>
    %c0_3 = arith.constant 0 : index
    %c0_4 = arith.constant 0 : index
    %3 = vector.load %arg3[%c0_3, %c0_4] : memref<8x128xf32, #tpu.memory_space<vmem>>, vector<8x128xf32>
    tpu.vector_store %arg3[%c0_3, %c0_4], %2 {strides = array<i32>} : memref<8x128xf32, #tpu.memory_space<vmem>>, vector<8x128xf32>,
    return
  }
  func.func @transform_0(%arg0: i32) -> (i32, i32) {
    %c0_i32 = arith.constant 0 : i32
    %c0_i32_0 = arith.constant 0 : i32
    return %arg0, %c0_i32 : i32, i32
  }
  func.func @transform_1(%arg0: i32) -> (i32, i32) {
    %c0_i32 = arith.constant 0 : i32
    %c0_i32_0 = arith.constant 0 : i32
    return %arg0, %c0_i32 : i32, i32
  }
  func.func @transform_2(%arg0: i32) -> (i32, i32) {
    %c0_i32 = arith.constant 0 : i32
    %c0_i32_0 = arith.constant 0 : i32
    return %arg0, %c0_i32 : i32, i32
  }
}

</mosaic_0001>

<llo_original>
// kernel: tpu_custom_call.1
$region0: #{tpu_custom_call.1}
  #allocation0 [shape = 'u32[]', space=smem, size = 0x4, offset = 0x4, fixed_abs, tag = 'smem constant byte address 0x4 - core index']
  #allocation1 [shape = 'u32[144,128]{1,0:T(1,128)}', space=vmem, size = 0x12000, scoped, tag = 'internal scratch']
  #allocation2 [shape = 's32[1]{0}', space=sflag, size = 0x4, scoped, tag = 'scoped memory for tpu_custom_call.1']
  #allocation3 [shape = 's32[1]{0:T(128)S(6)}', space=smem, size = 0x200, scoped, tag = 'prefetched SMEM operand 0']
  %s0 = inlined_call_operand.<no memory space> [shape: s32[1], index: 0, kind: input, shape index: {}]
  %s1 = inlined_call_operand.vmem [shape: f32[1,128], index: 1, kind: input, shape index: {}]
  %s2 = inlined_call_operand.hbm [shape: f32[16,128], index: 2, kind: input, shape index: {}]
  %s3 = inlined_call_operand.hbm [shape: f32[16,128], index: 3, kind: output, shape index: {}]
  %s4 = sld [smem:[#allocation0]]
  $region45: #{tpu_custom_call.1} parent=0
    _
  %s6 = ssub.s32 1, %s4
  %s7 = scalar_select 0, %s6, %s4
  %8 = sst [smem:[#allocation3]] %s0
  $region1: #{tpu_custom_call.1} parent=0
    #allocation4 [shape = 'u8[8192]{0}', space=vmem, size = 0x2000, scoped, tag = 'input window, operand 2']
    #allocation5 [shape = 's32[2]{0}', space=sflag, size = 0x8, scoped, tag = 'scoped memory for tpu_custom_call.1']
    #allocation6 [shape = 's32[2]{0}', space=sflag, size = 0x8, scoped, tag = 'scoped memory for tpu_custom_call.1']
    #allocation7 [shape = 'u8[8192]{0}', space=vmem, size = 0x2000, scoped, tag = 'output window, operand 0']
    %9 = vsyncpa [#allocation5], 0
    %s10 = scalar_lea.sflag [#allocation5], 1
    %11 = vsyncpa %s10, 0
    %12 = vsyncpa [#allocation6], 0
    %s13 = scalar_lea.sflag [#allocation6], 1
    %14 = vsyncpa %s13, 0
    loop: start=0, step=1, limit=4
    $region2: #{tpu_custom_call.1} parent=1 // loop_pre_header
      _
    $region3: #{tpu_custom_call.1} parent=1 // loop_header
      %s16 = sphi 0, %s20
      %p17 = scmp.ge.s32.totalorder %s16, 4
      %s24 = sphi 0, %s24
      %s26 = sphi 0, %s24
      %s27 = sphi 0, %s26
      %s41 = sphi 0, %s27
      %s47 = sphi 0, %s49
      %s50 = sphi 0, %s47
      %s51 = sphi 0, %s50
      %s67 = sphi 0, %s51
      %s73 = sphi 0, %s75
      %s76 = sphi 0, %s73
      %s77 = sphi 0, %s76
      %s93 = sphi 0, %s77
    $region4: #{tpu_custom_call.1} parent=1 // loop_header_branch
      %19 = sbr.rel (%p17) target = $region8
    $region5: #{tpu_custom_call.1} parent=1 // loop_body
      %s21 = ssub.s32 %s16, 1
      %s22 = ssub.s32 %s16, 2
      %s23 = sadd.s32 %s16, 1
      %s25 = sadd.s32 %s24, 1
      %p28 = scmp.eq.s32.totalorder %s16, 1
      %p29 = scmp.ne.s32.totalorder %s24, %s26
      %p30 = scmp.eq.s32.totalorder %s16, 0
      %p31 = por %p29, %p30
      %p32 = scmp.ne.s32.totalorder %s24, %s26
      %p33 = scmp.eq.s32.totalorder %s21, 1
      %p34 = por %p32, %p33
      %p35 = scmp.ne.s32.totalorder %s26, %s27
      %p36 = scmp.eq.s32.totalorder %s21, 0
      %p37 = por %p35, %p36
      %p38 = scmp.ne.s32.totalorder %s26, %s27
      %p39 = scmp.eq.s32.totalorder %s22, 1
      %p40 = por %p38, %p39
      %p42 = scmp.ne.s32.totalorder %s27, %s41
      %p43 = scmp.eq.s32.totalorder %s22, 0
      %p44 = por %p42, %p43
      %s45 = ssub.s32 %s16, %s23
      %p46 = scmp.eq.s32.totalorder %s45, 0
      %s48 = sadd.s32 %s47, 1
      %s49 = scalar_select %p46, %s47, %s48
      %p52 = pneg %p46
      %p53 = scmp.eq.s32.totalorder %s16, 1
      %p54 = por %p52, %p53
      %p55 = scmp.ne.s32.totalorder %s47, %s50
      %p56 = scmp.eq.s32.totalorder %s16, 0
      %p57 = por %p55, %p56
      %p58 = scmp.ne.s32.totalorder %s47, %s50
      %p59 = scmp.eq.s32.totalorder %s21, 1
      %p60 = por %p58, %p59
      %p61 = scmp.ne.s32.totalorder %s50, %s51
      %p62 = scmp.eq.s32.totalorder %s21, 0
      %p63 = por %p61, %p62
      %p64 = scmp.ne.s32.totalorder %s50, %s51
      %p65 = scmp.eq.s32.totalorder %s22, 1
      %p66 = por %p64, %p65
      %p68 = scmp.ne.s32.totalorder %s51, %s67
      %p69 = scmp.eq.s32.totalorder %s22, 0
      %p70 = por %p68, %p69
      %s71 = ssub.s32 %s16, %s23
      %p72 = scmp.eq.s32.totalorder %s71, 0
      %s74 = sadd.s32 %s73, 1
      %s75 = scalar_select %p72, %s73, %s74
      %p78 = pneg %p72
      %p79 = scmp.eq.s32.totalorder %s16, 1
      %p80 = por %p78, %p79
      %p81 = scmp.ne.s32.totalorder %s73, %s76
      %p82 = scmp.eq.s32.totalorder %s16, 0
      %p83 = por %p81, %p82
      %p84 = scmp.ne.s32.totalorder %s73, %s76
      %p85 = scmp.eq.s32.totalorder %s21, 1
      %p86 = por %p84, %p85
      %p87 = scmp.ne.s32.totalorder %s76, %s77
      %p88 = scmp.eq.s32.totalorder %s21, 0
      %p89 = por %p87, %p88
      %p90 = scmp.ne.s32.totalorder %s76, %s77
      %p91 = scmp.eq.s32.totalorder %s22, 1
      %p92 = por %p90, %p91
      %p94 = scmp.ne.s32.totalorder %s77, %s93
      %p95 = scmp.eq.s32.totalorder %s22, 0
      %p96 = por %p94, %p95
      %p97 = scmp.le.s32.totalorder 1, %s16
      %p98 = scmp.lt.s32.totalorder %s16, 3
      %p99 = pnand %p97, %p98
      %p100 = pneg %p99
      // Predicated region
      $region9: #{tpu_custom_call.1} parent=5 // pred_check
        _
      $region10: #{tpu_custom_call.1} parent=5 // pred_check_branch
        %102 = sbr.rel (%p99) target = $region12
      $region11: #{tpu_custom_call.1} parent=5 // pred_region
        %s103 = ssub.s32 %s16, 1
        // Predicated region
        $region13: #{tpu_custom_call.1} parent=11 // pred_check
          %p104 = pneg %p37
        $region14: #{tpu_custom_call.1} parent=11 // pred_check_branch
          %106 = sbr.rel (%p104) target = $region16
        $region15: #{tpu_custom_call.1} parent=11 // pred_region
          _
        $region16: #{tpu_custom_call.1} parent=11 // pred_fallthru
          _
      $region12: #{tpu_custom_call.1} parent=5 // pred_fallthru
        _
      %p107 = scmp.lt.s32.totalorder %s16, 2
      // Predicated region
      $region17: #{tpu_custom_call.1} parent=5 // pred_check
        %p108 = pneg %p107
      $region18: #{tpu_custom_call.1} parent=5 // pred_check_branch
        %110 = sbr.rel (%p108) target = $region20
      $region19: #{tpu_custom_call.1} parent=5 // pred_region
        // Predicated region
        $region21: #{tpu_custom_call.1} parent=19 // pred_check
          %p111 = pneg %p57
        $region22: #{tpu_custom_call.1} parent=19 // pred_check_branch
          %113 = sbr.rel (%p111) target = $region24
        $region23: #{tpu_custom_call.1} parent=19 // pred_region
          %s114 = sand.u32 %s47, 1
          %s115 = scalar_lea.sflag [#allocation5], %s114
          %s116 = sand.u32 %s47, 1
          %s117 = smul.addr %s116, 8
          %s118 = scalar_lea.vmem [#allocation4], %s117
          %s120 = ssub.s32 128, 128
          %121 = vsyncadd %s115, %s120
          %s122 = smul.addr %s16, 128
          %s123 = scalar_lea.hbm %s2, %s122
          %s125 = sshll.u32 %s118, 4
          %s126 = int_to_ptr.vmem [resolvable:$true] %s125
          %128 = dma.hbm_to_vmem [thread:$0]  %s123, 128, %s126, %s115
        $region24: #{tpu_custom_call.1} parent=19 // pred_fallthru
          _
      $region20: #{tpu_custom_call.1} parent=5 // pred_fallthru
        _
      %p129 = scmp.le.s32.totalorder 1, %s16
      %p130 = scmp.lt.s32.totalorder %s16, 3
      %p131 = pnand %p129, %p130
      %p132 = pneg %p131
      // Predicated region
      $region25: #{tpu_custom_call.1} parent=5 // pred_check
        _
      $region26: #{tpu_custom_call.1} parent=5 // pred_check_branch
        %134 = sbr.rel (%p131) target = $region28
      $region27: #{tpu_custom_call.1} parent=5 // pred_region
        %s135 = ssub.s32 %s16, 1
        %s136 = sand.u32 %s50, 1
        %s137 = scalar_lea.sflag [#allocation5], %s136
        %s138 = sand.u32 %s50, 1
        %s139 = smul.addr %s138, 8
        %s140 = scalar_lea.vmem [#allocation4], %s139
        // Predicated region
        $region29: #{tpu_custom_call.1} parent=27 // pred_check
          %p141 = pneg %p63
        $region30: #{tpu_custom_call.1} parent=27 // pred_check_branch
          %143 = sbr.rel (%p141) target = $region32
        $region31: #{tpu_custom_call.1} parent=27 // pred_region
          %144 = dma.done %s137, 128
        $region32: #{tpu_custom_call.1} parent=27 // pred_fallthru
          _
        %p145 = pneg %p37
        %p146 = pneg %p34
        %s147 = sand.u32 %s50, 1
        %s148 = scalar_lea.sflag [#allocation5], %s147
        %s149 = sand.u32 %s50, 1
        %s150 = smul.addr %s149, 8
        %s151 = scalar_lea.vmem [#allocation4], %s150
        %p152 = pneg %p63
        %p153 = pneg %p60
        %p154 = pneg %p89
        %p155 = pneg %p86
        %s156 = sand.u32 %s76, 1
        %s157 = scalar_lea.sflag [#allocation6], %s156
        %s158 = sand.u32 %s76, 1
        %s159 = smul.addr %s158, 8
        %s160 = scalar_lea.vmem [#allocation7], %s159
        %s161 = sld [smem:[#allocation3]]
        %s162 = smul.u32 %s21, 8
        %s163 = sadd.s32 %s161, %s162
        %v164 = vlaneseq
        %v165 = vshrl.u32 %v164, 7
        %v166 = vstv %s163
        %v167 = vadd.s32 %v165, %v166
        %v168 = vlaneseq
        %v169 = vand.u32 %v168, 127
        %v170 = vcvt.s32.f32 %v167
        %v171 = vld [vmem:[%s1] sm:$0x1]
        %v173 = vlaneseq
        %v174 = vshrl.u32 %v173, 7
        %v175 = vsub.s32 0, %v174
        %v176 = vrot.slane %v171, %v175
        %v178 = vmul.f32 %v170, %v176
        %vm179 = vcmp.lt.s32.totalorder %v169, 0
        %v180 = vsub.s32 0, %v169
        %v181 = vsel %vm179, %v180, %v169
        %v182 = vshrl.u32 %v181, 1
        %v183 = vand.u32 %v181, 1
        %v184 = vsub.s32 0, %v183
        %v185 = vsel %vm179, %v184, %v183
        %vm186 = vcmp.ne.s32.totalorder %v185, 0
        %vm187 = vcmp.lt.s32.totalorder %v185, 0
        %vm188 = vmand %vm187, %vm186
        %v189 = vadd.s32 %v185, 2
        %v190 = vsel %vm188, %v189, %v185
        %vm191 = vcmp.eq.s32.totalorder %v190, 1
        %v192 = vand.u32 2147483647, %v178
        %vm193 = vcmp.le.f32.partialorder %v192, 0.7853982
        %vm194 = vcmp.lt.s32.totalorder %v178, 0
        %v195 = vand.u32 %v178, 2139095040
        %v196 = vshrl.u32 %v195, 23
        %v197 = vsub.s32 %v196, 127
        %v198 = vand.u32 2147483647, %v178
        %v199 = vand.u32 %v198, 8388607
        %v200 = vor.u32 %v199, 8388608
        %v201 = vsub.s32 0, %v200
        %v202 = vadd.s32 %v197, 1
        %vm203 = vcmp.gt.s32.totalorder %v202, 0
        %v204 = vsel %vm203, %v202, 0
        %v205 = vshrl.u32 %v204, 5
        %v206 = vand.u32 %v204, 31
        %v207 = vsub.s32 32, %v206
        %v208 = vshrl.u32 683565275, %v207
        %v209 = vshll.u32 683565275, %v206
        %v210 = vshrl.u32 2475754826, %v207
        %v211 = vor.u32 %v209, %v210
        %v212 = vshll.u32 2475754826, %v206
        %v213 = vshrl.u32 2131351028, %v207
        %v214 = vor.u32 %v212, %v213
        %v215 = vshll.u32 2131351028, %v206
        %v216 = vshrl.u32 2102212464, %v207
        %v217 = vor.u32 %v215, %v216
        %v218 = vshll.u32 2102212464, %v206
        %v219 = vshrl.u32 920167782, %v207
        %v220 = vor.u32 %v218, %v219
        %v221 = vshll.u32 920167782, %v206
        %v222 = vshrl.u32 1326507024, %v207
        %v223 = vor.u32 %v221, %v222
        %vm224 = vcmp.lt.s32.totalorder %v205, 1
        %vm225 = vcmp.lt.s32.totalorder %v205, 2
        %vm226 = vcmp.lt.s32.totalorder %v205, 3
        %vm227 = vcmp.lt.s32.totalorder %v205, 4
        %v228 = vsel %vm224, %v208, %v211
        %v229 = vsel %vm227, %v217, 2102212464
        %v230 = vsel %vm226, %v214, %v229
        %v231 = vsel %vm225, %v228, %v230
        %v232 = vsel %vm224, %v211, %v214
        %v233 = vsel %vm227, %v220, 920167782
        %v234 = vsel %vm226, %v217, %v233
        %v235 = vsel %vm225, %v232, %v234
        %v236 = vsel %vm224, %v214, %v217
        %v237 = vsel %vm227, %v223, 1326507024
        %v238 = vsel %vm226, %v220, %v237
        %v239 = vsel %vm225, %v236, %v238
        %v240 = vshll.u32 %v200, 8
        %v241 = vmul.u32.u64.compose %v240, %v239
        %v242 = vextract.low.u32 %v241
        %v243 = vextract.high.u32 %v241
        %v244 = vmul.u32.u64.compose %v240, %v235
        %v245 = vextract.low.u32 %v244
        %v246 = vextract.high.u32 %v244
        %v247 = vmul.u32 %v240, %v231
        %v248 = vadd.s32 %v243, %v245
        %vm249 = vc.u32 %v243, %v245
        %v250 = vadd.s32 %v246, 1
        %v251 = vsel %vm249, %v250, %v246
        %v252 = vadd.s32 %v247, %v251
        %v253 = vadd.s32 %v252, 536870912
        %v254 = vshrl.u32 %v253, 30
        %v255 = vshll.u32 %v254, 30
        %v256 = vsub.s32 %v252, %v255
        %vm257 = vcmp.lt.s32.totalorder %v256, 0
        %v258 = vsub.s32 0, %v256
        %v259 = vsel %vm257, %v258, %v256
        %v260 = vclz %v259
        %v261 = vsub.s32 %v260, 2
        %vm262 = vcmp.gt.s32.totalorder 0, %v261
        %v263 = vsel %vm262, 0, %v261
        %v264 = vsub.s32 32, %v263
        %v265 = vshll.u32 %v256, %v263
        %v266 = vshrl.u32 %v248, %v264
        %v267 = vor.u32 %v265, %v266
        %v268 = vsub.s32 4294967266, %v263
        %v269 = vadd.s32 %v268, 127
        %v270 = vshll.u32 %v269, 23
        %v271 = vor.u32 4788187, %v270
        %v272 = vand.u32 2147483647, %v271
        %v274 = vcvt.s32.f32 %v267
        %v275 = vmul.f32 %v274, %v272
        %v276 = vxor.u32 %v275, 2147483648
        %v277 = vsel %vm194, %v276, %v275
        %v278 = vsub.s32 4, %v254
        %v279 = vsel %vm194, %v278, %v254
        %v280 = vsel %vm193, %v178, %v277
        %v281 = vsel %vm193, 0, %v279
        %v282 = vcosq.f32.pop %v280
        %v283 = vsinq.f32.pop %v280
        %vm284 = vweird.f32 %v178
        %v285 = vand.u32 %v281, 3
        %vm286 = vcmp.lt.s32.totalorder %v285, 2
        %vm287 = vcmp.eq.s32.totalorder %v285, 0
        %v288 = vxor.u32 %v283, 2147483648
        %v289 = vsel %vm287, %v282, %v288
        %vm290 = vcmp.eq.s32.totalorder %v285, 2
        %v291 = vxor.u32 %v282, 2147483648
        %v292 = vsel %vm290, %v291, %v283
        %v293 = vsel %vm286, %v289, %v292
        %v294 = vsel %vm284, nan, %v293
        %v295 = vand.u32 2147483647, %v178
        %vm296 = vcmp.le.f32.partialorder %v295, 0.7853982
        %vm297 = vcmp.lt.s32.totalorder %v178, 0
        %v298 = vand.u32 %v178, 2139095040
        %v299 = vshrl.u32 %v298, 23
        %v300 = vsub.s32 %v299, 127
        %v301 = vand.u32 2147483647, %v178
        %v302 = vand.u32 %v301, 8388607
        %v303 = vor.u32 %v302, 8388608
        %v304 = vsub.s32 0, %v303
        %v305 = vadd.s32 %v300, 1
        %vm306 = vcmp.gt.s32.totalorder %v305, 0
        %v307 = vsel %vm306, %v305, 0
        %v308 = vshrl.u32 %v307, 5
        %v309 = vand.u32 %v307, 31
        %v310 = vsub.s32 32, %v309
        %v311 = vshrl.u32 683565275, %v310
        %v312 = vshll.u32 683565275, %v309
        %v313 = vshrl.u32 2475754826, %v310
        %v314 = vor.u32 %v312, %v313
        %v315 = vshll.u32 2475754826, %v309
        %v316 = vshrl.u32 2131351028, %v310
        %v317 = vor.u32 %v315, %v316
        %v318 = vshll.u32 2131351028, %v309
        %v319 = vshrl.u32 2102212464, %v310
        %v320 = vor.u32 %v318, %v319
        %v321 = vshll.u32 2102212464, %v309
        %v322 = vshrl.u32 920167782, %v310
        %v323 = vor.u32 %v321, %v322
        %v324 = vshll.u32 920167782, %v309
        %v325 = vshrl.u32 1326507024, %v310
        %v326 = vor.u32 %v324, %v325
        %vm327 = vcmp.lt.s32.totalorder %v308, 1
        %vm328 = vcmp.lt.s32.totalorder %v308, 2
        %vm329 = vcmp.lt.s32.totalorder %v308, 3
        %vm330 = vcmp.lt.s32.totalorder %v308, 4
        %v331 = vsel %vm327, %v311, %v314
        %v332 = vsel %vm330, %v320, 2102212464
        %v333 = vsel %vm329, %v317, %v332
        %v334 = vsel %vm328, %v331, %v333
        %v335 = vsel %vm327, %v314, %v317
        %v336 = vsel %vm330, %v323, 920167782
        %v337 = vsel %vm329, %v320, %v336
        %v338 = vsel %vm328, %v335, %v337
        %v339 = vsel %vm327, %v317, %v320
        %v340 = vsel %vm330, %v326, 1326507024
        %v341 = vsel %vm329, %v323, %v340
        %v342 = vsel %vm328, %v339, %v341
        %v343 = vshll.u32 %v303, 8
        %v344 = vmul.u32.u64.compose %v343, %v342
        %v345 = vextract.low.u32 %v344
        %v346 = vextract.high.u32 %v344
        %v347 = vmul.u32.u64.compose %v343, %v338
        %v348 = vextract.low.u32 %v347
        %v349 = vextract.high.u32 %v347
        %v350 = vmul.u32 %v343, %v334
        %v351 = vadd.s32 %v346, %v348
        %vm352 = vc.u32 %v346, %v348
        %v353 = vadd.s32 %v349, 1
        %v354 = vsel %vm352, %v353, %v349
        %v355 = vadd.s32 %v350, %v354
        %v356 = vadd.s32 %v355, 536870912
        %v357 = vshrl.u32 %v356, 30
        %v358 = vshll.u32 %v357, 30
        %v359 = vsub.s32 %v355, %v358
        %vm360 = vcmp.lt.s32.totalorder %v359, 0
        %v361 = vsub.s32 0, %v359
        %v362 = vsel %vm360, %v361, %v359
        %v363 = vclz %v362
        %v364 = vsub.s32 %v363, 2
        %vm365 = vcmp.gt.s32.totalorder 0, %v364
        %v366 = vsel %vm365, 0, %v364
        %v367 = vsub.s32 32, %v366
        %v368 = vshll.u32 %v359, %v366
        %v369 = vshrl.u32 %v351, %v367
        %v370 = vor.u32 %v368, %v369
        %v371 = vsub.s32 4294967266, %v366
        %v372 = vadd.s32 %v371, 127
        %v373 = vshll.u32 %v372, 23
        %v374 = vor.u32 4788187, %v373
        %v375 = vand.u32 2147483647, %v374
        %v377 = vcvt.s32.f32 %v370
        %v378 = vmul.f32 %v377, %v375
        %v379 = vxor.u32 %v378, 2147483648
        %v380 = vsel %vm297, %v379, %v378
        %v381 = vsub.s32 4, %v357
        %v382 = vsel %vm297, %v381, %v357
        %v383 = vsel %vm296, %v178, %v380
        %v384 = vsel %vm296, 0, %v382
        %v385 = vcosq.f32.pop %v383
        %v386 = vsinq.f32.pop %v383
        %vm387 = vweird.f32 %v178
        %v388 = vadd.s32 %v384, 3
        %v389 = vand.u32 %v388, 3
        %vm390 = vcmp.lt.s32.totalorder %v389, 2
        %vm391 = vcmp.eq.s32.totalorder %v389, 0
        %v392 = vxor.u32 %v386, 2147483648
        %v393 = vsel %vm391, %v385, %v392
        %vm394 = vcmp.eq.s32.totalorder %v389, 2
        %v395 = vxor.u32 %v385, 2147483648
        %v396 = vsel %vm394, %v395, %v386
        %v397 = vsel %vm390, %v393, %v396
        %v398 = vsel %vm387, nan, %v397
        %v399 = vsel %vm191, %v294, %v398
        %v400 = vld [vmem:[%s140] sm:$0xff]
        %v401 = vadd.f32 %v400, %v399
        %402 = vst [vmem:[%s160] sm:$0xff] %v401
        %s403 = sand.u32 %s76, 1
        %s404 = scalar_lea.sflag [#allocation6], %s403
        %s405 = sand.u32 %s76, 1
        %s406 = smul.addr %s405, 8
        %s407 = scalar_lea.vmem [#allocation7], %s406
        // Predicated region
        $region33: #{tpu_custom_call.1} parent=27 // pred_check
          %p408 = pneg %p86
        $region34: #{tpu_custom_call.1} parent=27 // pred_check_branch
          %410 = sbr.rel (%p408) target = $region36
        $region35: #{tpu_custom_call.1} parent=27 // pred_region
          %s412 = ssub.s32 128, 128
          %413 = vsyncadd %s404, %s412
          %s414 = smul.addr %s21, 128
          %s415 = scalar_lea.hbm %s3, %s414
          %s417 = sshll.u32 %s407, 4
          %s418 = int_to_ptr.vmem [resolvable:$true] %s417
          %420 = dma.vmem_to_hbm [thread:$0]  %s418, 128, %s415, %s404
        $region36: #{tpu_custom_call.1} parent=27 // pred_fallthru
          _
      $region28: #{tpu_custom_call.1} parent=5 // pred_fallthru
        _
      %p421 = scmp.le.s32.totalorder 2, %s16
      // Predicated region
      $region37: #{tpu_custom_call.1} parent=5 // pred_check
        %p422 = pneg %p421
      $region38: #{tpu_custom_call.1} parent=5 // pred_check_branch
        %424 = sbr.rel (%p422) target = $region40
      $region39: #{tpu_custom_call.1} parent=5 // pred_region
        %s425 = ssub.s32 %s16, 2
        // Predicated region
        $region41: #{tpu_custom_call.1} parent=39 // pred_check
          %p426 = pneg %p92
        $region42: #{tpu_custom_call.1} parent=39 // pred_check_branch
          %428 = sbr.rel (%p426) target = $region44
        $region43: #{tpu_custom_call.1} parent=39 // pred_region
          %s429 = sand.u32 %s77, 1
          %s430 = scalar_lea.sflag [#allocation6], %s429
          %s431 = sand.u32 %s77, 1
          %s432 = smul.addr %s431, 8
          %s433 = scalar_lea.vmem [#allocation7], %s432
          %434 = dma.done %s430, 128
        $region44: #{tpu_custom_call.1} parent=39 // pred_fallthru
          _
      $region40: #{tpu_custom_call.1} parent=5 // pred_fallthru
        _
    $region6: #{tpu_custom_call.1} parent=1 // loop_footer
      %s20 = sadd.s32 1, %s16
    $region7: #{tpu_custom_call.1} parent=1 // loop_footer_branch
      %15 = sbr.rel target = $region3
    $region8: #{tpu_custom_call.1} parent=1 // loop_exit
      _
    %435 = vsyncpa [#allocation5], 1
    %s436 = scalar_lea.sflag [#allocation5], 1
    %437 = vsyncpa %s436, 1
    %438 = vsyncpa [#allocation6], 1
    %s439 = scalar_lea.sflag [#allocation6], 1
    %440 = vsyncpa %s439, 1

// kernel: tpu_custom_call.1
$region0: #{tpu_custom_call.1}
  #allocation0 [shape = 'u32[]', space=smem, size = 0x4, offset = 0x4, fixed_abs, tag = 'smem constant byte address 0x4 - core index']
  #allocation1 [shape = 'u32[144,128]{1,0:T(1,128)}', space=vmem, size = 0x12000, scoped, tag = 'internal scratch']
  %s0 = inlined_call_operand.hbm [shape: f32[16,128], index: 0, kind: input, shape index: {}]
  %s1 = inlined_call_operand.hbm [shape: f32[16,128], index: 1, kind: input, shape index: {}]
  %s2 = inlined_call_operand.hbm [shape: f32[16,128], index: 2, kind: output, shape index: {}]
  %s3 = sld [smem:[#allocation0]]
  $region49: #{tpu_custom_call.1} parent=0
    _
  %s5 = ssub.s32 1, %s3
  %s6 = scalar_select 0, %s5, %s3
  $region1: #{tpu_custom_call.1} parent=0
    #allocation2 [shape = 'u8[8192]{0}', space=vmem, size = 0x2000, scoped, tag = 'input window, operand 0']
    #allocation3 [shape = 's32[2]{0}', space=sflag, size = 0x8, scoped, tag = 'scoped memory for tpu_custom_call.1']
    #allocation4 [shape = 's32[2]{0}', space=sflag, size = 0x8, scoped, tag = 'scoped memory for tpu_custom_call.1']
    #allocation5 [shape = 'u8[8192]{0}', space=vmem, size = 0x2000, scoped, tag = 'input window, operand 1']
    #allocation6 [shape = 's32[2]{0}', space=sflag, size = 0x8, scoped, tag = 'scoped memory for tpu_custom_call.1']
    #allocation7 [shape = 'u8[8192]{0}', space=vmem, size = 0x2000, scoped, tag = 'output window, operand 0']
    %7 = vsyncpa [#allocation3], 0
    %s8 = scalar_lea.sflag [#allocation3], 1
    %9 = vsyncpa %s8, 0
    %10 = vsyncpa [#allocation6], 0
    %s11 = scalar_lea.sflag [#allocation6], 1
    %12 = vsyncpa %s11, 0
    %13 = vsyncpa [#allocation4], 0
    %s14 = scalar_lea.sflag [#allocation4], 1
    %15 = vsyncpa %s14, 0
    loop: start=0, step=1, limit=4
    $region2: #{tpu_custom_call.1} parent=1 // loop_pre_header
      _
    $region3: #{tpu_custom_call.1} parent=1 // loop_header
      %s17 = sphi 0, %s21
      %p18 = scmp.ge.s32.totalorder %s17, 4
      %s27 = sphi 0, %s29
      %s30 = sphi 0, %s27
      %s31 = sphi 0, %s30
      %s47 = sphi 0, %s31
      %s53 = sphi 0, %s55
      %s56 = sphi 0, %s53
      %s57 = sphi 0, %s56
      %s73 = sphi 0, %s57
      %s79 = sphi 0, %s81
      %s82 = sphi 0, %s79
      %s83 = sphi 0, %s82
      %s99 = sphi 0, %s83
    $region4: #{tpu_custom_call.1} parent=1 // loop_header_branch
      %20 = sbr.rel (%p18) target = $region8
    $region5: #{tpu_custom_call.1} parent=1 // loop_body
      %s22 = ssub.s32 %s17, 1
      %s23 = ssub.s32 %s17, 2
      %s24 = sadd.s32 %s17, 1
      %s25 = ssub.s32 %s17, %s24
      %p26 = scmp.eq.s32.totalorder %s25, 0
      %s28 = sadd.s32 %s27, 1
      %s29 = scalar_select %p26, %s27, %s28
      %p32 = pneg %p26
      %p33 = scmp.eq.s32.totalorder %s17, 1
      %p34 = por %p32, %p33
      %p35 = scmp.ne.s32.totalorder %s27, %s30
      %p36 = scmp.eq.s32.totalorder %s17, 0
      %p37 = por %p35, %p36
      %p38 = scmp.ne.s32.totalorder %s27, %s30
      %p39 = scmp.eq.s32.totalorder %s22, 1
      %p40 = por %p38, %p39
      %p41 = scmp.ne.s32.totalorder %s30, %s31
      %p42 = scmp.eq.s32.totalorder %s22, 0
      %p43 = por %p41, %p42
      %p44 = scmp.ne.s32.totalorder %s30, %s31
      %p45 = scmp.eq.s32.totalorder %s23, 1
      %p46 = por %p44, %p45
      %p48 = scmp.ne.s32.totalorder %s31, %s47
      %p49 = scmp.eq.s32.totalorder %s23, 0
      %p50 = por %p48, %p49
      %s51 = ssub.s32 %s17, %s24
      %p52 = scmp.eq.s32.totalorder %s51, 0
      %s54 = sadd.s32 %s53, 1
      %s55 = scalar_select %p52, %s53, %s54
      %p58 = pneg %p52
      %p59 = scmp.eq.s32.totalorder %s17, 1
      %p60 = por %p58, %p59
      %p61 = scmp.ne.s32.totalorder %s53, %s56
      %p62 = scmp.eq.s32.totalorder %s17, 0
      %p63 = por %p61, %p62
      %p64 = scmp.ne.s32.totalorder %s53, %s56
      %p65 = scmp.eq.s32.totalorder %s22, 1
      %p66 = por %p64, %p65
      %p67 = scmp.ne.s32.totalorder %s56, %s57
      %p68 = scmp.eq.s32.totalorder %s22, 0
      %p69 = por %p67, %p68
      %p70 = scmp.ne.s32.totalorder %s56, %s57
      %p71 = scmp.eq.s32.totalorder %s23, 1
      %p72 = por %p70, %p71
      %p74 = scmp.ne.s32.totalorder %s57, %s73
      %p75 = scmp.eq.s32.totalorder %s23, 0
      %p76 = por %p74, %p75
      %s77 = ssub.s32 %s17, %s24
      %p78 = scmp.eq.s32.totalorder %s77, 0
      %s80 = sadd.s32 %s79, 1
      %s81 = scalar_select %p78, %s79, %s80
      %p84 = pneg %p78
      %p85 = scmp.eq.s32.totalorder %s17, 1
      %p86 = por %p84, %p85
      %p87 = scmp.ne.s32.totalorder %s79, %s82
      %p88 = scmp.eq.s32.totalorder %s17, 0
      %p89 = por %p87, %p88
      %p90 = scmp.ne.s32.totalorder %s79, %s82
      %p91 = scmp.eq.s32.totalorder %s22, 1
      %p92 = por %p90, %p91
      %p93 = scmp.ne.s32.totalorder %s82, %s83
      %p94 = scmp.eq.s32.totalorder %s22, 0
      %p95 = por %p93, %p94
      %p96 = scmp.ne.s32.totalorder %s82, %s83
      %p97 = scmp.eq.s32.totalorder %s23, 1
      %p98 = por %p96, %p97
      %p100 = scmp.ne.s32.totalorder %s83, %s99
      %p101 = scmp.eq.s32.totalorder %s23, 0
      %p102 = por %p100, %p101
      %p103 = scmp.le.s32.totalorder 1, %s17
      %p104 = scmp.lt.s32.totalorder %s17, 3
      %p105 = pnand %p103, %p104
      %p106 = pneg %p105
      // Predicated region
      $region9: #{tpu_custom_call.1} parent=5 // pred_check
        _
      $region10: #{tpu_custom_call.1} parent=5 // pred_check_branch
        %108 = sbr.rel (%p105) target = $region12
      $region11: #{tpu_custom_call.1} parent=5 // pred_region
        %s109 = ssub.s32 %s17, 1
      $region12: #{tpu_custom_call.1} parent=5 // pred_fallthru
        _
      %p110 = scmp.lt.s32.totalorder %s17, 2
      // Predicated region
      $region13: #{tpu_custom_call.1} parent=5 // pred_check
        %p111 = pneg %p110
      $region14: #{tpu_custom_call.1} parent=5 // pred_check_branch
        %113 = sbr.rel (%p111) target = $region16
      $region15: #{tpu_custom_call.1} parent=5 // pred_region
        // Predicated region
        $region17: #{tpu_custom_call.1} parent=15 // pred_check
          %p114 = pneg %p37
        $region18: #{tpu_custom_call.1} parent=15 // pred_check_branch
          %116 = sbr.rel (%p114) target = $region20
        $region19: #{tpu_custom_call.1} parent=15 // pred_region
          %s117 = sand.u32 %s27, 1
          %s118 = scalar_lea.sflag [#allocation3], %s117
          %s119 = sand.u32 %s27, 1
          %s120 = smul.addr %s119, 8
          %s121 = scalar_lea.vmem [#allocation2], %s120
          %s123 = ssub.s32 128, 128
          %124 = vsyncadd %s118, %s123
          %s125 = smul.addr %s17, 128
          %s126 = scalar_lea.hbm %s0, %s125
          %s128 = sshll.u32 %s121, 4
          %s129 = int_to_ptr.vmem [resolvable:$true] %s128
          %131 = dma.hbm_to_vmem [thread:$0]  %s126, 128, %s129, %s118
        $region20: #{tpu_custom_call.1} parent=15 // pred_fallthru
          _
        // Predicated region
        $region21: #{tpu_custom_call.1} parent=15 // pred_check
          %p132 = pneg %p63
        $region22: #{tpu_custom_call.1} parent=15 // pred_check_branch
          %134 = sbr.rel (%p132) target = $region24
        $region23: #{tpu_custom_call.1} parent=15 // pred_region
          %s135 = sand.u32 %s53, 1
          %s136 = scalar_lea.sflag [#allocation6], %s135
          %s137 = sand.u32 %s53, 1
          %s138 = smul.addr %s137, 8
          %s139 = scalar_lea.vmem [#allocation5], %s138
          %s141 = ssub.s32 128, 128
          %142 = vsyncadd %s136, %s141
          %s143 = smul.addr %s17, 128
          %s144 = scalar_lea.hbm %s1, %s143
          %s146 = sshll.u32 %s139, 4
          %s147 = int_to_ptr.vmem [resolvable:$true] %s146
          %149 = dma.hbm_to_vmem [thread:$0]  %s144, 128, %s147, %s136
        $region24: #{tpu_custom_call.1} parent=15 // pred_fallthru
          _
      $region16: #{tpu_custom_call.1} parent=5 // pred_fallthru
        _
      %p150 = scmp.le.s32.totalorder 1, %s17
      %p151 = scmp.lt.s32.totalorder %s17, 3
      %p152 = pnand %p150, %p151
      %p153 = pneg %p152
      // Predicated region
      $region25: #{tpu_custom_call.1} parent=5 // pred_check
        _
      $region26: #{tpu_custom_call.1} parent=5 // pred_check_branch
        %155 = sbr.rel (%p152) target = $region28
      $region27: #{tpu_custom_call.1} parent=5 // pred_region
        %s156 = ssub.s32 %s17, 1
        %s157 = sand.u32 %s30, 1
        %s158 = scalar_lea.sflag [#allocation3], %s157
        %s159 = sand.u32 %s30, 1
        %s160 = smul.addr %s159, 8
        %s161 = scalar_lea.vmem [#allocation2], %s160
        // Predicated region
        $region29: #{tpu_custom_call.1} parent=27 // pred_check
          %p162 = pneg %p43
        $region30: #{tpu_custom_call.1} parent=27 // pred_check_branch
          %164 = sbr.rel (%p162) target = $region32
        $region31: #{tpu_custom_call.1} parent=27 // pred_region
          %165 = dma.done %s158, 128
        $region32: #{tpu_custom_call.1} parent=27 // pred_fallthru
          _
        %s166 = sand.u32 %s56, 1
        %s167 = scalar_lea.sflag [#allocation6], %s166
        %s168 = sand.u32 %s56, 1
        %s169 = smul.addr %s168, 8
        %s170 = scalar_lea.vmem [#allocation5], %s169
        // Predicated region
        $region33: #{tpu_custom_call.1} parent=27 // pred_check
          %p171 = pneg %p69
        $region34: #{tpu_custom_call.1} parent=27 // pred_check_branch
          %173 = sbr.rel (%p171) target = $region36
        $region35: #{tpu_custom_call.1} parent=27 // pred_region
          %174 = dma.done %s167, 128
        $region36: #{tpu_custom_call.1} parent=27 // pred_fallthru
          _
        %s175 = sand.u32 %s30, 1
        %s176 = scalar_lea.sflag [#allocation3], %s175
        %s177 = sand.u32 %s30, 1
        %s178 = smul.addr %s177, 8
        %s179 = scalar_lea.vmem [#allocation2], %s178
        %p180 = pneg %p43
        %p181 = pneg %p40
        %s182 = sand.u32 %s56, 1
        %s183 = scalar_lea.sflag [#allocation6], %s182
        %s184 = sand.u32 %s56, 1
        %s185 = smul.addr %s184, 8
        %s186 = scalar_lea.vmem [#allocation5], %s185
        %p187 = pneg %p69
        %p188 = pneg %p66
        %p189 = pneg %p95
        %p190 = pneg %p92
        %s191 = sand.u32 %s82, 1
        %s192 = scalar_lea.sflag [#allocation4], %s191
        %s193 = sand.u32 %s82, 1
        %s194 = smul.addr %s193, 8
        %s195 = scalar_lea.vmem [#allocation7], %s194
        %v196 = vld [vmem:[%s170] sm:$0xff]
        %v197 = vld [vmem:[%s161] sm:$0xff]
        %v198 = vadd.f32 %v196, %v197
        %199 = vst [vmem:[%s195] sm:$0xff] %v198
        %s200 = sand.u32 %s82, 1
        %s201 = scalar_lea.sflag [#allocation4], %s200
        %s202 = sand.u32 %s82, 1
        %s203 = smul.addr %s202, 8
        %s204 = scalar_lea.vmem [#allocation7], %s203
        // Predicated region
        $region37: #{tpu_custom_call.1} parent=27 // pred_check
          %p205 = pneg %p92
        $region38: #{tpu_custom_call.1} parent=27 // pred_check_branch
          %207 = sbr.rel (%p205) target = $region40
        $region39: #{tpu_custom_call.1} parent=27 // pred_region
          %s209 = ssub.s32 128, 128
          %210 = vsyncadd %s201, %s209
          %s211 = smul.addr %s22, 128
          %s212 = scalar_lea.hbm %s2, %s211
          %s214 = sshll.u32 %s204, 4
          %s215 = int_to_ptr.vmem [resolvable:$true] %s214
          %217 = dma.vmem_to_hbm [thread:$0]  %s215, 128, %s212, %s201
        $region40: #{tpu_custom_call.1} parent=27 // pred_fallthru
          _
      $region28: #{tpu_custom_call.1} parent=5 // pred_fallthru
        _
      %p218 = scmp.le.s32.totalorder 2, %s17
      // Predicated region
      $region41: #{tpu_custom_call.1} parent=5 // pred_check
        %p219 = pneg %p218
      $region42: #{tpu_custom_call.1} parent=5 // pred_check_branch
        %221 = sbr.rel (%p219) target = $region44
      $region43: #{tpu_custom_call.1} parent=5 // pred_region
        %s222 = ssub.s32 %s17, 2
        // Predicated region
        $region45: #{tpu_custom_call.1} parent=43 // pred_check
          %p223 = pneg %p98
        $region46: #{tpu_custom_call.1} parent=43 // pred_check_branch
          %225 = sbr.rel (%p223) target = $region48
        $region47: #{tpu_custom_call.1} parent=43 // pred_region
          %s226 = sand.u32 %s83, 1
          %s227 = scalar_lea.sflag [#allocation4], %s226
          %s228 = sand.u32 %s83, 1
          %s229 = smul.addr %s228, 8
          %s230 = scalar_lea.vmem [#allocation7], %s229
          %231 = dma.done %s227, 128
        $region48: #{tpu_custom_call.1} parent=43 // pred_fallthru
          _
      $region44: #{tpu_custom_call.1} parent=5 // pred_fallthru
        _
    $region6: #{tpu_custom_call.1} parent=1 // loop_footer
      %s21 = sadd.s32 1, %s17
    $region7: #{tpu_custom_call.1} parent=1 // loop_footer_branch
      %16 = sbr.rel target = $region3
    $region8: #{tpu_custom_call.1} parent=1 // loop_exit
      _
    %232 = vsyncpa [#allocation3], 1
    %s233 = scalar_lea.sflag [#allocation3], 1
    %234 = vsyncpa %s233, 1
    %235 = vsyncpa [#allocation6], 1
    %s236 = scalar_lea.sflag [#allocation6], 1
    %237 = vsyncpa %s236, 1
    %238 = vsyncpa [#allocation4], 1
    %s239 = scalar_lea.sflag [#allocation4], 1
    %240 = vsyncpa %s239, 1

</llo_original>
